<compile_context>
chip_gen: v7x
topology: tpu7x:2x2x1
jax: 0.10.0
libtpu: 0.0.40
codegen_flags: <defaults>
</compile_context>

<pallas_src>
import functools

import jax
import jax.numpy as jnp
from jax.experimental import pallas as pl
from jax.experimental.pallas import tpu as pltpu


def _tv_kernel(x_ref, o_ref, *, w):
    # x_ref: (tn, L) block of flattened images (one row = one H*W image).
    # o_ref: (1, 8, 128) lane-dense slab holding this block's partial sum.
    x = x_ref[...]
    l = x.shape[1]

    total = jnp.zeros((), jnp.float32)

    if w > 1:
        # Horizontal neighbours: |x[p] - x[p+1]|, valid where p % W != W-1
        # (the seam between consecutive image rows is masked out).
        d = jnp.abs(x[:, 1:] - x[:, :-1])
        pos = jax.lax.broadcasted_iota(jnp.int32, d.shape, 1)
        d = jnp.where(pos % w != w - 1, d, 0)
        total = total + jnp.sum(d.astype(jnp.float32))

    if l > w:
        # Vertical neighbours: |x[p] - x[p+W]| for p < L-W; every such pair is
        # a valid (h, h+1) pair, so no mask is required.
        d = jnp.abs(x[:, w:] - x[:, :-w])
        total = total + jnp.sum(d.astype(jnp.float32))

    # Lane-dense, unmasked store of the per-block partial sum.
    o_ref[...] = jnp.broadcast_to(total, o_ref.shape)


def total_vary_loss(x, weight=1.0, *, vmem_budget_bytes=32 * 1024 * 1024):
    """Forward pass of TotalVaryLoss. x is NCHW; returns a shape-(1,) f32 loss."""
    B, C, H, W = x.shape
    N, L = B * C, H * W
    # Merge leading contiguous dims and flatten the image -> lane-dense last dim.
    x2 = x.reshape(N, L)

    itemsize = jnp.dtype(x.dtype).itemsize
    sublane = {4: 8, 2: 16, 1: 32}.get(itemsize, 8)      # sublane packing per dtype
    lane_padded = pl.cdiv(L, 128) * 128                   # (.,128) lane padding

    # Padded VMEM working set per block row: double-buffered input + shifted /
    # |diff| temporaries (input dtype) + f32 accumulation temporaries.
    per_row_bytes = 4 * lane_padded * itemsize + 4 * lane_padded * 4
    rows_budget = max(1, vmem_budget_bytes // per_row_bytes)
    if N <= sublane:
        tn = N                                             # full extent -> always legal
    else:
        tn = max(sublane, (min(rows_budget, N) // sublane) * sublane)
    grid_n = pl.cdiv(N, tn)
    # TODO(synk): single images whose padded flattened row alone exceeds the
    # VMEM budget (H*W ~> 1M f32 pixels) should also tile the pixel axis with a
    # W-pixel halo; they currently fall back to an 8/16-row block.

    # Zero-pad the leading axis so the row tile divides it exactly: zero rows
    # contribute exactly 0 to both TV terms, so no in-kernel row masking and no
    # reliance on out-of-bounds block contents is needed.
    n_pad = grid_n * tn - N
    if n_pad:
        x2 = jnp.concatenate([x2, jnp.zeros((n_pad, L), x2.dtype)], axis=0)

    cost = pl.CostEstimate(
        flops=6 * N * H * W,                               # sub + abs + add, both terms
        transcendentals=0,
        bytes_accessed=(N + n_pad) * L * itemsize + grid_n * 8 * 128 * 4,
    )

    partials = pl.pallas_call(
        functools.partial(_tv_kernel, w=W),
        out_shape=jax.ShapeDtypeStruct((grid_n, 8, 128), jnp.float32),
        grid=(grid_n,),
        in_specs=[pl.BlockSpec((tn, L), lambda i: (i, 0))],
        out_specs=pl.BlockSpec((1, 8, 128), lambda i: (i, 0, 0)),
        compiler_params=pltpu.CompilerParams(
            # Independent per-block partial sums -> shardable across TCs (v7x).
            dimension_semantics=("parallel",),
            # Fits v7x's 64 MiB physical VMEM with headroom; raises v5e default.
            vmem_limit_bytes=48 * 1024 * 1024,
        ),
        cost_estimate=cost,
    )(x2)

    loss = jnp.asarray(weight, jnp.float32) * jnp.sum(partials[:, 0, 0])
    return loss.reshape(1)                                  # match FloatTensor(1) loss


def _ref_forward(x, weight=1.0):
    """Pure-JAX reference mirroring the PyTorch forward."""
    return weight * (jnp.sum(jnp.abs(x[:, :, :, :-1] - x[:, :, :, 1:]))
                     + jnp.sum(jnp.abs(x[:, :, :-1, :] - x[:, :, 1:, :])))


if __name__ == "__main__":
    key = jax.random.PRNGKey(0)
    k1, k2 = jax.random.split(key)

    # Small NCHW input consistent with the module.
    x = jax.random.normal(k1, (2, 4, 16, 16), jnp.float32)
    out = jax.block_until_ready(total_vary_loss(x, weight=1.0))
    ref = _ref_forward(x, 1.0)
    assert out.shape == (1,), out.shape
    assert jnp.allclose(out[0], ref, rtol=1e-4, atol=1e-3), (float(out[0]), float(ref))

    # Non-default weight and an N = B*C that does not divide the row tile
    # (exercises the zero-padding path and multi-block partial sums).
    y = jax.random.normal(k2, (3, 5, 16, 16), jnp.float32)
    out2 = jax.block_until_ready(total_vary_loss(y, weight=0.5))
    ref2 = _ref_forward(y, 0.5)
    assert jnp.allclose(out2[0], ref2, rtol=1e-4, atol=1e-3), (float(out2[0]), float(ref2))

    print("KERNEL_OK")
</pallas_src>

<mosaic_0001>
module attributes {stable_mosaic.version = 11 : i64} {
  func.func @_tv_kernel(%arg0: i32, %arg1: memref<8x256xf32, #tpu.memory_space<vmem>>, %arg2: memref<1x8x128xf32, #tpu.memory_space<vmem>>) attributes {dimension_semantics = [#tpu.dimension_semantics<parallel>], iteration_bounds = array<i64: 1>, scalar_prefetch = 0 : i64, scratch_operands = 0 : i64, tpu.core_type = #tpu.core_type<tc>, window_params = [{transform_indices = @transform_0, window_bounds = array<i64: 8, 256>}, {transform_indices = @transform_1, window_bounds = array<i64: 1, 8, 128>}]} {
    %c0 = arith.constant 0 : index
    %c0_0 = arith.constant 0 : index
    %0 = vector.load %arg1[%c0, %c0_0] : memref<8x256xf32, #tpu.memory_space<vmem>>, vector<8x256xf32>
    %1 = vector.extract_strided_slice %0 {offsets = [0, 1], sizes = [8, 255], strides = [1, 1]} : vector<8x256xf32> to vector<8x255xf32>
    %2 = vector.extract_strided_slice %0 {offsets = [0, 0], sizes = [8, 255], strides = [1, 1]} : vector<8x256xf32> to vector<8x255xf32>
    %3 = arith.subf %1, %2 : vector<8x255xf32>
    %4 = math.absf %3 : vector<8x255xf32>
    %5 = tpu.iota {dimensions = array<i32: 1>} : vector<8x255xi32>
    %c16_i32 = arith.constant 16 : i32
    %c0_i32 = arith.constant 0 : i32
    %6 = arith.cmpi eq, %c16_i32, %c0_i32 : i32
    %c1_i32 = arith.constant 1 : i32
    %7 = arith.select %6, %c1_i32, %c16_i32 : i32
    %8 = vector.broadcast %7 : i32 to vector<8x255xi32>
    %9 = arith.remsi %5, %8 : vector<8x255xi32>
    %c0_i32_1 = arith.constant 0 : i32
    %10 = vector.broadcast %c0_i32_1 : i32 to vector<8x255xi32>
    %11 = arith.cmpi ne, %9, %10 : vector<8x255xi32>
    %c0_i32_2 = arith.constant 0 : i32
    %12 = vector.broadcast %c0_i32_2 : i32 to vector<8x255xi32>
    %13 = arith.cmpi slt, %9, %12 : vector<8x255xi32>
    %c0_i32_3 = arith.constant 0 : i32
    %14 = arith.cmpi slt, %7, %c0_i32_3 : i32
    %15 = vector.broadcast %14 : i1 to vector<8x255xi1>
    %16 = vector.broadcast %15 : vector<8x255xi1> to vector<8x255xi1>
    %17 = arith.xori %13, %16 : vector<8x255xi1>
    %18 = arith.andi %17, %11 : vector<8x255xi1>
    %19 = vector.broadcast %7 : i32 to vector<8x255xi32>
    %20 = arith.addi %9, %19 : vector<8x255xi32>
    %21 = arith.select %18, %20, %9 : vector<8x255xi1>, vector<8x255xi32>
    %c15_i32 = arith.constant 15 : i32
    %22 = vector.broadcast %c15_i32 : i32 to vector<8x255xi32>
    %23 = arith.cmpi ne, %21, %22 : vector<8x255xi32>
    %c0_i32_4 = arith.constant 0 : i32
    %24 = arith.sitofp %c0_i32_4 : i32 to f32
    %25 = vector.broadcast %24 : f32 to vector<8x255xf32>
    %26 = arith.select %23, %4, %25 : vector<8x255xi1>, vector<8x255xf32>
    %27 = vector.shape_cast %26 : vector<8x255xf32> to vector<1x8x255xf32>
    %cst = arith.constant dense<0.000000e+00> : vector<1xf32>
    %28 = vector.multi_reduction <add>, %27, %cst [1, 2] : vector<1x8x255xf32> to vector<1xf32>
    %29 = vector.shape_cast %28 : vector<1xf32> to vector<1x1x1xf32>
    %30 = vector.extract %29[0, 0, 0] : f32 from vector<1x1x1xf32>
    %cst_5 = arith.constant 0.000000e+00 : f32
    %31 = arith.addf %cst_5, %30 : f32
    %32 = vector.extract_strided_slice %0 {offsets = [0, 16], sizes = [8, 240], strides = [1, 1]} : vector<8x256xf32> to vector<8x240xf32>
    %33 = vector.extract_strided_slice %0 {offsets = [0, 0], sizes = [8, 240], strides = [1, 1]} : vector<8x256xf32> to vector<8x240xf32>
    %34 = arith.subf %32, %33 : vector<8x240xf32>
    %35 = math.absf %34 : vector<8x240xf32>
    %36 = vector.shape_cast %35 : vector<8x240xf32> to vector<1x8x240xf32>
    %cst_6 = arith.constant dense<0.000000e+00> : vector<1xf32>
    %37 = vector.multi_reduction <add>, %36, %cst_6 [1, 2] : vector<1x8x240xf32> to vector<1xf32>
    %38 = vector.shape_cast %37 : vector<1xf32> to vector<1x1x1xf32>
    %39 = vector.extract %38[0, 0, 0] : f32 from vector<1x1x1xf32>
    %40 = arith.addf %31, %39 : f32
    %41 = vector.broadcast %40 : f32 to vector<1x8x128xf32>
    %c0_7 = arith.constant 0 : index
    %c0_8 = arith.constant 0 : index
    %c0_9 = arith.constant 0 : index
    %42 = vector.load %arg2[%c0_7, %c0_8, %c0_9] : memref<1x8x128xf32, #tpu.memory_space<vmem>>, vector<1x8x128xf32>
    tpu.vector_store %arg2[%c0_7, %c0_8, %c0_9], %41 {strides = array<i32>} : memref<1x8x128xf32, #tpu.memory_space<vmem>>, vector<1x8x128xf32>,
    return
  }
  func.func @transform_0(%arg0: i32) -> (i32, i32) {
    %c0_i32 = arith.constant 0 : i32
    %c0_i32_0 = arith.constant 0 : i32
    return %arg0, %c0_i32 : i32, i32
  }
  func.func @transform_1(%arg0: i32) -> (i32, i32, i32) {
    %c0_i32 = arith.constant 0 : i32
    %c0_i32_0 = arith.constant 0 : i32
    %c0_i32_1 = arith.constant 0 : i32
    return %arg0, %c0_i32, %c0_i32_0 : i32, i32, i32
  }
}

</mosaic_0001>

<llo_original>
// kernel: tpu_custom_call.1
$region0: #{tpu_custom_call.1}
  #allocation0 [shape = 'u32[]', space=smem, size = 0x4, offset = 0x4, fixed_abs, tag = 'smem constant byte address 0x4 - core index']
  #allocation1 [shape = 'u32[144,128]{1,0:T(1,128)}', space=vmem, size = 0x12000, scoped, tag = 'internal scratch']
  %s0 = inlined_call_operand.hbm [shape: f32[8,256], index: 0, kind: input, shape index: {}]
  %s1 = inlined_call_operand.hbm [shape: f32[1,8,128], index: 1, kind: output, shape index: {}]
  %s2 = sld [smem:[#allocation0]]
  $region18: #{tpu_custom_call.1} parent=0
    _
  %s4 = ssub.s32 1, %s2
  %s5 = scalar_select 0, %s4, %s2
  $region1: #{tpu_custom_call.1} parent=0
    #allocation2 [shape = 'u8[8192]{0}', space=vmem, size = 0x2000, scoped, tag = 'input window, operand 0, single buffered']
    #allocation3 [shape = 's32[1]{0}', space=sflag, size = 0x4, scoped, tag = 'scoped memory for tpu_custom_call.1']
    #allocation4 [shape = 's32[1]{0}', space=sflag, size = 0x4, scoped, tag = 'scoped memory for tpu_custom_call.1']
    #allocation5 [shape = 'u8[4096]{0}', space=vmem, size = 0x1000, scoped, tag = 'output window, operand 0, single buffered']
    %6 = vsyncpa [#allocation3], 0
    %7 = vsyncpa [#allocation4], 0
    // Predicated region
    $region2: #{tpu_custom_call.1} parent=1 // pred_check
      _
    $region3: #{tpu_custom_call.1} parent=1 // pred_check_branch
      %9 = sbr.rel (0) target = $region5
    $region4: #{tpu_custom_call.1} parent=1 // pred_region
      %s11 = ssub.s32 256, 256
      %12 = vsyncadd [#allocation3], %s11
      %s14 = sshll.u32 [#allocation2], 4
      %s15 = int_to_ptr.vmem [resolvable:$true] %s14
      %17 = dma.hbm_to_vmem [thread:$0]  %s0, 256, %s15, [#allocation3]
    $region5: #{tpu_custom_call.1} parent=1 // pred_fallthru
      _
    // Predicated region
    $region6: #{tpu_custom_call.1} parent=1 // pred_check
      _
    $region7: #{tpu_custom_call.1} parent=1 // pred_check_branch
      %19 = sbr.rel (0) target = $region9
    $region8: #{tpu_custom_call.1} parent=1 // pred_region
      %20 = dma.done [#allocation3], 256
    $region9: #{tpu_custom_call.1} parent=1 // pred_fallthru
      _
    %v21 = vld [vmem:[#allocation2] sm:$0xff]
    %v22 = vld [vmem:[#allocation2 + $0x8] sm:$0xff]
    %25 = vrot.lane.b32.xlu0 %v21, 1
    %v26 = vpop.permute.xlu0 %25
    %27 = vrot.lane.b32.xlu0 %v22, 1
    %v28 = vpop.permute.xlu0 %27
    %vm29 = vcmask 7168
    %v30 = vsel %vm29, %v26, %v28
    %v33 = vsub.f32 %v21, %v26
    %v34 = vsub.f32 %v22, %v30
    %v35 = vand.u32 2147483647, %v33
    %v36 = vand.u32 2147483647, %v34
    %v37 = vlaneseq
    %v38 = vand.u32 %v37, 127
    %v39 = vadd.s32 %v38, 128
    %vm40 = vcmp.lt.s32.totalorder %v38, 0
    %v41 = vsub.s32 0, %v38
    %v42 = vsel %vm40, %v41, %v38
    %v43 = vshrl.u32 %v42, 4
    %v44 = vand.u32 %v42, 15
    %v45 = vsub.s32 0, %v44
    %v46 = vsel %vm40, %v45, %v44
    %vm47 = vcmp.lt.s32.totalorder %v39, 0
    %v48 = vsub.s32 0, %v39
    %v49 = vsel %vm47, %v48, %v39
    %v50 = vshrl.u32 %v49, 4
    %v51 = vand.u32 %v49, 15
    %v52 = vsub.s32 0, %v51
    %v53 = vsel %vm47, %v52, %v51
    %vm54 = vcmp.ne.s32.totalorder %v46, 0
    %vm55 = vcmp.ne.s32.totalorder %v53, 0
    %vm56 = vcmp.lt.s32.totalorder %v46, 0
    %vm57 = vcmp.lt.s32.totalorder %v53, 0
    %vm58 = vmand %vm56, %vm54
    %vm59 = vmand %vm57, %vm55
    %v60 = vadd.s32 %v46, 16
    %v61 = vadd.s32 %v53, 16
    %v62 = vsel %vm58, %v60, %v46
    %v63 = vsel %vm59, %v61, %v53
    %vm64 = vcmp.ne.s32.totalorder %v62, 15
    %vm65 = vcmp.ne.s32.totalorder %v63, 15
    %68 = vrot.lane.b32.xlu0 %v35, 127
    %v69 = vpop.permute.xlu0 %68
    %70 = vrot.lane.b32.xlu0 %v36, 127
    %v71 = vpop.permute.xlu0 %70
    %vm72 = vcmask 1039360
    %v73 = vsel %vm72, %v69, %v71
    %v76 = vsel %vm64, %v73, 0.0
    %v77 = vsel %vm65, %v71, 0.0
    %v78 = vsel %vm72, %v77, 0.0
    %v79 = vadd.f32 %v76, %v78
    %80 = vadd.xlane.f32.xlu0 %v79
    %v81 = vpop.xlane.xlu0 %80
    %v82 = vrot.slane %v81, 4
    %v83 = vadd.f32 %v81, %v82
    %v84 = vrot.slane %v83, 2
    %v85 = vadd.f32 %v83, %v84
    %v86 = vrot.slane %v85, 1
    %v87 = vadd.f32 %v85, %v86
    %s88 = vtos %v87
    %s89 = sadd.f32 %s88, 0.0
    %90 = vrot.lane.b32.xlu0 %v21, 16
    %v91 = vpop.permute.xlu0 %90
    %92 = vrot.lane.b32.xlu0 %v22, 16
    %v93 = vpop.permute.xlu0 %92
    %vm94 = vcmask 130048
    %v95 = vsel %vm94, %v91, %v93
    %v98 = vsub.f32 %v21, %v91
    %v99 = vsub.f32 %v22, %v95
    %v100 = vand.u32 2147483647, %v98
    %v101 = vand.u32 2147483647, %v99
    %104 = vrot.lane.b32.xlu0 %v100, 112
    %v105 = vpop.permute.xlu0 %104
    %106 = vrot.lane.b32.xlu0 %v101, 112
    %v107 = vpop.permute.xlu0 %106
    %vm108 = vcmask 916480
    %v109 = vsel %vm108, %v105, %v107
    %v112 = vsel %vm108, %v107, 0.0
    %v113 = vadd.f32 %v109, %v112
    %114 = vadd.xlane.f32.xlu0 %v113
    %v115 = vpop.xlane.xlu0 %114
    %v116 = vrot.slane %v115, 4
    %v117 = vadd.f32 %v115, %v116
    %v118 = vrot.slane %v117, 2
    %v119 = vadd.f32 %v117, %v118
    %v120 = vrot.slane %v119, 1
    %v121 = vadd.f32 %v119, %v120
    %s122 = vtos %v121
    %s123 = sadd.f32 %s89, %s122
    %v124 = vstv %s123
    %125 = vst [vmem:[#allocation5] sm:$0xff] %v124
    // Predicated region
    $region10: #{tpu_custom_call.1} parent=1 // pred_check
      _
    $region11: #{tpu_custom_call.1} parent=1 // pred_check_branch
      %127 = sbr.rel (0) target = $region13
    $region12: #{tpu_custom_call.1} parent=1 // pred_region
      %s129 = ssub.s32 128, 128
      %130 = vsyncadd [#allocation4], %s129
      %s132 = sshll.u32 [#allocation5], 4
      %s133 = int_to_ptr.vmem [resolvable:$true] %s132
      %135 = dma.vmem_to_hbm [thread:$0]  %s133, 128, %s1, [#allocation4]
    $region13: #{tpu_custom_call.1} parent=1 // pred_fallthru
      _
    // Predicated region
    $region14: #{tpu_custom_call.1} parent=1 // pred_check
      _
    $region15: #{tpu_custom_call.1} parent=1 // pred_check_branch
      %137 = sbr.rel (0) target = $region17
    $region16: #{tpu_custom_call.1} parent=1 // pred_region
      %138 = dma.done [#allocation4], 128
    $region17: #{tpu_custom_call.1} parent=1 // pred_fallthru
      _
    %139 = vsyncpa [#allocation3], 1
    %140 = vsyncpa [#allocation4], 1

</llo_original>
